<compile_context>
chip_gen: v7x
topology: tpu7x:2x2x1
jax: 0.10.0
libtpu: 0.0.40
codegen_flags: <defaults>
</compile_context>

<pallas_src>
import jax
import jax.numpy as jnp
from jax.experimental import pallas as pl
from jax.experimental.pallas import tpu as pltpu

LANE = 128


def _h_sigmoid_kernel(x_ref, o_ref):
    # ReLU6(x + 3) / 6 == clamp(x + 3, 0, 6) * (1/6).
    # 4-5 VALU ops per vreg; kernel is HBM-bound so compute has huge slack.
    x = x_ref[...].astype(jnp.float32)
    y = jnp.minimum(jnp.maximum(x + 3.0, 0.0), 6.0) * (1.0 / 6.0)
    o_ref[...] = y.astype(o_ref.dtype)


def _round_up(a, b):
    return pl.cdiv(a, b) * b


def _chip_params():
    """Generation-aware tuning -> (target_block_bytes, min_steps_or_None)."""
    kind = ""
    try:
        kind = str(jax.devices()[0].device_kind).lower()
    except Exception:
        pass
    if "v7" in kind or "tpu7" in kind:
        # v7x: ~3.2 TB/s HBM -> bigger blocks to hide the fixed step cost;
        # 2 TensorCores -> keep a few grid steps on medium tensors.
        return 5 * 1024 * 1024, 4
    if "v6" in kind:
        # v6e: single TC, ~1.4 TB/s, 32 MiB scoped-VMEM default.
        return 4 * 1024 * 1024, None
    # v5e / unknown: single TC, 16 MiB scoped-VMEM default -> stay at 2 MiB.
    return 2 * 1024 * 1024, None


def h_sigmoid(x):
    """Elementwise hard sigmoid (ReLU6(x+3)/6). Any shape; compute in Pallas."""
    orig_shape = x.shape
    dtype = x.dtype
    n = x.size
    if n == 0:
        return x
    itemsize = jnp.dtype(dtype).itemsize
    # Native sublane tile: (8,128) f32, (16,128) bf16/f16, (32,128) int8/fp8.
    subl = max(8, 32 // max(1, itemsize))

    target_block_bytes, min_steps = _chip_params()

    x_flat = jnp.ravel(x)  # contiguous reshape: layout no-op, no HBM pass

    if n % LANE == 0:
        # ---- Dense lane-packed (rows, 128) slab, blocked along rows. ----
        rows = n // LANE
        arr = x_flat.reshape(rows, LANE)
        row_bytes = LANE * itemsize
        rows_rounded = _round_up(rows, subl)

        block_rows = max(subl, (target_block_bytes // row_bytes) // subl * subl)
        # v7x only: keep >= min_steps grid steps so both TensorCores get work,
        # but never shrink blocks below ~2 MiB. Skipped on single-TC parts.
        if min_steps is not None and pl.cdiv(rows, block_rows) < min_steps:
            min_rows = max(subl, ((2 * 1024 * 1024) // row_bytes) // subl * subl)
            candidate = _round_up(pl.cdiv(rows, min_steps), subl)
            block_rows = max(min_rows, min(block_rows, candidate))
        block_rows = min(block_rows, rows_rounded)

        grid = (pl.cdiv(rows, block_rows),)   # ragged last block masked by Pallas
        block_shape = (block_rows, LANE)
        index_map = lambda i: (i, 0)
        out_shape = jax.ShapeDtypeStruct((rows, LANE), dtype)
        block_vmem_bytes = block_rows * LANE * itemsize
    else:
        # ---- Not 128-aligned: (1, n) view blocked along the lane dim. ----
        # No wrapper pad/concat and no output slice (no extra HBM passes);
        # only the single ragged final block pays masked stores.
        arr = x_flat.reshape(1, n)
        lanes_rounded = _round_up(n, LANE)
        # A (1, K) block is sublane-padded in VMEM (8x f32 / 16x bf16), so size
        # the block by its VMEM footprint (~4 MiB per buffer) to stay safe.
        per_buf_vmem_target = 4 * 1024 * 1024
        block_lanes = max(LANE,
                          (per_buf_vmem_target // (subl * itemsize)) // LANE * LANE)
        block_lanes = min(block_lanes, lanes_rounded)

        grid = (pl.cdiv(n, block_lanes),)
        block_shape = (1, block_lanes)
        index_map = lambda i: (0, i)
        out_shape = jax.ShapeDtypeStruct((1, n), dtype)
        block_vmem_bytes = subl * block_lanes * itemsize  # sublane-padded

    # in + out, each double-buffered by the BlockSpec pipeline.
    vmem_need = 4 * block_vmem_bytes
    vmem_limit = (vmem_need + (8 << 20)) if vmem_need > (12 << 20) else None

    compiler_kwargs = dict(dimension_semantics=("parallel",))
    if vmem_limit is not None:
        compiler_kwargs["vmem_limit_bytes"] = int(vmem_limit)

    out2d = pl.pallas_call(
        _h_sigmoid_kernel,
        out_shape=out_shape,
        grid_spec=pltpu.PrefetchScalarGridSpec(
            num_scalar_prefetch=0,
            grid=grid,
            in_specs=[pl.BlockSpec(block_shape, index_map)],
            out_specs=pl.BlockSpec(block_shape, index_map),
        ),
        compiler_params=pltpu.CompilerParams(**compiler_kwargs),
    )(arr)

    return out2d.reshape(orig_shape)


def _ref(x):
    return jnp.clip(x + 3.0, 0.0, 6.0) / 6.0


if __name__ == "__main__":
    key = jax.random.PRNGKey(0)
    k0, k1 = jax.random.split(key)

    # Primary case: NCHW activation, 128-aligned element count (dense path).
    x = jax.random.normal(k0, (2, 4, 16, 16), dtype=jnp.float32) * 4.0
    y = jax.block_until_ready(h_sigmoid(x))
    assert y.shape == x.shape and y.dtype == x.dtype
    assert jnp.allclose(y, _ref(x), atol=1e-6), "mismatch vs reference (f32)"

    # Non-128-aligned element count: exercises the pad-free ragged (1, n) path.
    x2 = jax.random.normal(k1, (3, 5, 7, 11), dtype=jnp.float32) * 4.0
    y2 = jax.block_until_ready(h_sigmoid(x2))
    assert y2.shape == x2.shape
    assert jnp.allclose(y2, _ref(x2), atol=1e-6), "mismatch vs reference (ragged)"

    # bf16: exercises the dtype-aware tiling and f32-compute / bf16-store path.
    x3 = x.astype(jnp.bfloat16)
    y3 = jax.block_until_ready(h_sigmoid(x3))
    assert y3.shape == x3.shape and y3.dtype == jnp.bfloat16
    assert jnp.allclose(y3.astype(jnp.float32),
                        _ref(x3.astype(jnp.float32)), atol=2e-2), \
        "mismatch vs reference (bf16)"

    print("KERNEL_OK")
</pallas_src>

<mosaic_0001>
module attributes {stable_mosaic.version = 11 : i64} {
  func.func @_h_sigmoid_kernel(%arg0: i32, %arg1: memref<16x128xf32, #tpu.memory_space<vmem>>, %arg2: memref<16x128xf32, #tpu.memory_space<vmem>>) attributes {dimension_semantics = [#tpu.dimension_semantics<parallel>], iteration_bounds = array<i64: 1>, scalar_prefetch = 0 : i64, scratch_operands = 0 : i64, tpu.core_type = #tpu.core_type<tc>, window_params = [{transform_indices = @transform_0, window_bounds = array<i64: 16, 128>}, {transform_indices = @transform_1, window_bounds = array<i64: 16, 128>}]} {
    %c0 = arith.constant 0 : index
    %c0_0 = arith.constant 0 : index
    %0 = vector.load %arg1[%c0, %c0_0] : memref<16x128xf32, #tpu.memory_space<vmem>>, vector<16x128xf32>
    %cst = arith.constant 3.000000e+00 : f32
    %1 = vector.broadcast %cst : f32 to vector<16x128xf32>
    %2 = arith.addf %0, %1 : vector<16x128xf32>
    %cst_1 = arith.constant 0.000000e+00 : f32
    %3 = vector.broadcast %cst_1 : f32 to vector<16x128xf32>
    %4 = arith.maximumf %2, %3 : vector<16x128xf32>
    %cst_2 = arith.constant 6.000000e+00 : f32
    %5 = vector.broadcast %cst_2 : f32 to vector<16x128xf32>
    %6 = arith.minimumf %4, %5 : vector<16x128xf32>
    %cst_3 = arith.constant 0.166666672 : f32
    %7 = vector.broadcast %cst_3 : f32 to vector<16x128xf32>
    %8 = arith.mulf %6, %7 : vector<16x128xf32>
    %c0_4 = arith.constant 0 : index
    %c0_5 = arith.constant 0 : index
    %9 = vector.load %arg2[%c0_4, %c0_5] : memref<16x128xf32, #tpu.memory_space<vmem>>, vector<16x128xf32>
    tpu.vector_store %arg2[%c0_4, %c0_5], %8 {strides = array<i32>} : memref<16x128xf32, #tpu.memory_space<vmem>>, vector<16x128xf32>,
    return
  }
  func.func @transform_0(%arg0: i32) -> (i32, i32) {
    %c0_i32 = arith.constant 0 : i32
    %c0_i32_0 = arith.constant 0 : i32
    return %arg0, %c0_i32 : i32, i32
  }
  func.func @transform_1(%arg0: i32) -> (i32, i32) {
    %c0_i32 = arith.constant 0 : i32
    %c0_i32_0 = arith.constant 0 : i32
    return %arg0, %c0_i32 : i32, i32
  }
}

</mosaic_0001>

<llo_original>
// kernel: tpu_custom_call.1
$region0: #{tpu_custom_call.1}
  #allocation0 [shape = 'u32[]', space=smem, size = 0x4, offset = 0x4, fixed_abs, tag = 'smem constant byte address 0x4 - core index']
  #allocation1 [shape = 'u32[144,128]{1,0:T(1,128)}', space=vmem, size = 0x12000, scoped, tag = 'internal scratch']
  %s0 = inlined_call_operand.hbm [shape: f32[16,128], index: 0, kind: input, shape index: {}]
  %s1 = inlined_call_operand.hbm [shape: f32[16,128], index: 1, kind: output, shape index: {}]
  %s2 = sld [smem:[#allocation0]]
  $region18: #{tpu_custom_call.1} parent=0
    _
  %s4 = ssub.s32 1, %s2
  %s5 = scalar_select 0, %s4, %s2
  $region1: #{tpu_custom_call.1} parent=0
    #allocation2 [shape = 'u8[8192]{0}', space=vmem, size = 0x2000, scoped, tag = 'input window, operand 0, single buffered']
    #allocation3 [shape = 's32[1]{0}', space=sflag, size = 0x4, scoped, tag = 'scoped memory for tpu_custom_call.1']
    #allocation4 [shape = 's32[1]{0}', space=sflag, size = 0x4, scoped, tag = 'scoped memory for tpu_custom_call.1']
    #allocation5 [shape = 'u8[8192]{0}', space=vmem, size = 0x2000, scoped, tag = 'output window, operand 0, single buffered']
    %6 = vsyncpa [#allocation3], 0
    %7 = vsyncpa [#allocation4], 0
    // Predicated region
    $region2: #{tpu_custom_call.1} parent=1 // pred_check
      _
    $region3: #{tpu_custom_call.1} parent=1 // pred_check_branch
      %9 = sbr.rel (0) target = $region5
    $region4: #{tpu_custom_call.1} parent=1 // pred_region
      %s11 = ssub.s32 256, 256
      %12 = vsyncadd [#allocation3], %s11
      %s13 = sshll.u32 [#allocation2], 4
      %s14 = int_to_ptr.vmem [resolvable:$true] %s13
      %19 = dma.hbm_to_vmem [thread:$0]  %s0, 256, %s14, [#allocation3], 128, 128, 8
    $region5: #{tpu_custom_call.1} parent=1 // pred_fallthru
      _
    // Predicated region
    $region6: #{tpu_custom_call.1} parent=1 // pred_check
      _
    $region7: #{tpu_custom_call.1} parent=1 // pred_check_branch
      %21 = sbr.rel (0) target = $region9
    $region8: #{tpu_custom_call.1} parent=1 // pred_region
      %22 = dma.done [#allocation3], 256
    $region9: #{tpu_custom_call.1} parent=1 // pred_fallthru
      _
    %v23 = vld [vmem:[#allocation2] sm:$0xff]
    %v24 = vld [vmem:[#allocation2 + $0x8] sm:$0xff]
    %v25 = vadd.f32 %v23, 3.0
    %v26 = vadd.f32 %v24, 3.0
    %v27 = vmax.f32 %v25, 0.0
    %v28 = vmax.f32 %v26, 0.0
    %v29 = vmin.f32 %v27, 6.0
    %v30 = vmin.f32 %v28, 6.0
    %v31 = vmul.f32 %v29, 0.16666667
    %v32 = vmul.f32 %v30, 0.16666667
    %33 = vst [vmem:[#allocation5] sm:$0xff] %v31
    %34 = vst [vmem:[#allocation5 + $0x8] sm:$0xff] %v32
    // Predicated region
    $region10: #{tpu_custom_call.1} parent=1 // pred_check
      _
    $region11: #{tpu_custom_call.1} parent=1 // pred_check_branch
      %36 = sbr.rel (0) target = $region13
    $region12: #{tpu_custom_call.1} parent=1 // pred_region
      %s38 = ssub.s32 256, 256
      %39 = vsyncadd [#allocation4], %s38
      %s40 = sshll.u32 [#allocation5], 4
      %s41 = int_to_ptr.vmem [resolvable:$true] %s40
      %46 = dma.vmem_to_hbm [thread:$0]  %s41, 256, %s1, [#allocation4], 128, 128, 8
    $region13: #{tpu_custom_call.1} parent=1 // pred_fallthru
      _
    // Predicated region
    $region14: #{tpu_custom_call.1} parent=1 // pred_check
      _
    $region15: #{tpu_custom_call.1} parent=1 // pred_check_branch
      %48 = sbr.rel (0) target = $region17
    $region16: #{tpu_custom_call.1} parent=1 // pred_region
      %49 = dma.done [#allocation4], 256
    $region17: #{tpu_custom_call.1} parent=1 // pred_fallthru
      _
    %50 = vsyncpa [#allocation3], 1
    %51 = vsyncpa [#allocation4], 1

</llo_original>
